<compile_context>
chip_gen: v5e
topology: v5e:2x2
jax: 0.10.0
libtpu: 0.0.40
codegen_flags: <defaults>
</compile_context>

<pallas_src>
import functools
from typing import NamedTuple

import jax
import jax.numpy as jnp
from jax.experimental import pallas as pl
from jax.experimental.pallas import tpu as pltpu

_LANE = 128
_SUBLANE = 8


def _round_up(x, m):
    return (x + m - 1) // m * m


def _choose_td(d_pad):
    """Largest D tile <= 512 that divides d_pad (d_pad is a multiple of 128)."""
    if d_pad <= 512:
        return d_pad
    for t in range(512, 0, -_LANE):
        if d_pad % t == 0:
            return t
    return _LANE


class ClassifierParams(NamedTuple):
    tok_a: jax.Array        # (V_pad, D_pad) table streamed by the softmax-matmul
    tok_b: jax.Array        # (V_pad, D_pad) f32 table used by the gather kernel
    pos: jax.Array          # (max_pos, D_pad) f32 positional table
    vocab_size: int
    d_model: int
    v_pad: int
    d_pad: int
    tk: int                 # vocab tile for the streamed matmul
    td: int                 # D tile for the streamed matmul
    resident_gather: bool   # gather from a VMEM-resident table (small tables)


def prepare_classifier(token_embed_data, pos_embed_data, *,
                       use_bf16_matmul=False,
                       vmem_budget_bytes=24 * 1024 * 1024,
                       max_batch_hint=8,
                       max_tk=None,
                       resident_table_max_bytes=8 * 1024 * 1024):
    """One-time weight preparation (pad + cast hoisted out of the call path)."""
    V, D = token_embed_data.shape
    d_pad = _round_up(D, _LANE)
    td = _choose_td(d_pad)

    a_dtype = jnp.bfloat16 if use_bf16_matmul else jnp.float32
    itemsize = 2 if use_bf16_matmul else 4

    # Largest vocab tile whose double-buffered (tk, td) table stream plus the
    # double-buffered gumbel/logits blocks fit the per-generation VMEM budget.
    per_tk_bytes = 2 * td * itemsize + 2 * max_batch_hint * 4 + 8
    tk_cap = max(_LANE, (vmem_budget_bytes // per_tk_bytes) // _LANE * _LANE)
    if max_tk is not None:
        tk_cap = min(tk_cap, _round_up(max_tk, _LANE))

    v_lane = _round_up(V, _LANE)
    kt = -(-v_lane // tk_cap)                       # ceil
    tk = _round_up(-(-v_lane // kt), _LANE)         # minimal padding per tile
    v_pad = kt * tk

    f32 = jnp.float32
    tok_b = jnp.pad(jnp.asarray(token_embed_data, f32),
                    ((0, v_pad - V), (0, d_pad - D)))
    tok_a = tok_b.astype(a_dtype) if use_bf16_matmul else tok_b
    pos = jnp.pad(jnp.asarray(pos_embed_data, f32), ((0, 0), (0, d_pad - D)))

    resident = int(tok_b.size) * tok_b.dtype.itemsize <= resident_table_max_bytes
    return ClassifierParams(tok_a=tok_a, tok_b=tok_b, pos=pos,
                            vocab_size=V, d_model=D, v_pad=v_pad, d_pad=d_pad,
                            tk=tk, td=td, resident_gather=resident)


# ---------------------------------------------------------------------------
# Kernel A, fast path (whole padded vocab in one tile): plain softmax + dot.
# ---------------------------------------------------------------------------
def _learned_single_kernel(logits_ref, gumbel_ref, tok_ref, inv_tau_ref,
                           out_ref, *, dot_precision):
    y = (logits_ref[...] + gumbel_ref[...]) * inv_tau_ref[0, 0]     # (B, V_pad)
    m = jnp.max(y, axis=-1, keepdims=True)
    p = jnp.exp(y - m)
    denom = jnp.sum(p, axis=-1, keepdims=True)
    probs = (p * pl.reciprocal(denom)).astype(tok_ref.dtype)
    out_ref[...] = jnp.dot(probs, tok_ref[...],
                           preferred_element_type=jnp.float32,
                           precision=dot_precision)


# ---------------------------------------------------------------------------
# Kernel A, streamed path: online softmax over vocab tiles, D-tiled.
# Grid: (D_pad // TD, V_pad // TK) = ("parallel", "arbitrary").
# ---------------------------------------------------------------------------
def _learned_stream_kernel(logits_ref, gumbel_ref, tok_ref, inv_tau_ref,
                           out_ref, m_sc, l_sc, acc_sc, *, dot_precision):
    k = pl.program_id(1)

    @pl.when(k == 0)
    def _init():
        m_sc[...] = jnp.full(m_sc.shape, -jnp.inf, dtype=m_sc.dtype)
        l_sc[...] = jnp.zeros(l_sc.shape, dtype=l_sc.dtype)
        acc_sc[...] = jnp.zeros(acc_sc.shape, dtype=acc_sc.dtype)

    y = (logits_ref[...] + gumbel_ref[...]) * inv_tau_ref[0, 0]     # (B, TK)

    m_prev = m_sc[...]
    m_new = jnp.maximum(m_prev, jnp.max(y, axis=-1, keepdims=True))
    alpha = jnp.exp(m_prev - m_new)
    p = jnp.exp(y - m_new)

    l_sc[...] = alpha * l_sc[...] + jnp.sum(p, axis=-1, keepdims=True)
    acc_sc[...] = alpha * acc_sc[...] + jnp.dot(
        p.astype(tok_ref.dtype), tok_ref[...],
        preferred_element_type=jnp.float32, precision=dot_precision)
    m_sc[...] = m_new

    @pl.when(k == pl.num_programs(1) - 1)
    def _finalize():
        out_ref[...] = acc_sc[...] * pl.reciprocal(l_sc[...])


# ---------------------------------------------------------------------------
# Kernel B, resident-table path: dynamic row gather from a VMEM-resident table.
# Grid: (B // TB,) "parallel"; TB sequences per step.
# ---------------------------------------------------------------------------
def _gather_resident_kernel(ids_ref, tok_ref, pos_ref, learned_ref, out_ref,
                            *, seq_len, tb):
    g = pl.program_id(0)
    base = g * (tb * seq_len)
    for t in range(tb):
        for j in range(seq_len):
            r = t * seq_len + j
            if j == 1:
                # token_embeddings[:, 1, :] = learned_token_to_count[b]
                out_ref[pl.ds(r, 1), :] = learned_ref[t] + pos_ref[pl.ds(j, 1), :]
            else:
                idx = ids_ref[base + r]
                out_ref[pl.ds(r, 1), :] = (tok_ref[pl.ds(idx, 1), :]
                                           + pos_ref[pl.ds(j, 1), :])


# ---------------------------------------------------------------------------
# Kernel B, large-table path: per-row HBM DMA gather, double-buffered across
# batches (prefetch batch b+1's rows while finishing batch b).
# Grid: (B,) "arbitrary" (cross-step carry in the scratch buffers).
# ---------------------------------------------------------------------------
def _gather_dma_kernel(ids_ref, tok_hbm_ref, pos_ref, learned_ref, out_ref,
                       rows_vmem, copy_sems, *, seq_len):
    b = pl.program_id(0)
    nb = pl.num_programs(0)
    slot = b & 1

    def issue(batch_idx, sl):
        for j in range(seq_len):
            if j == 1:
                continue  # row 1 is overwritten with the learned embedding
            pltpu.make_async_copy(
                tok_hbm_ref.at[ids_ref[batch_idx * seq_len + j]],
                rows_vmem.at[sl, j], copy_sems.at[sl, j]).start()

    @pl.when(b == 0)
    def _prime():
        issue(0, 0)

    @pl.when(b + 1 < nb)
    def _prefetch_next():
        issue(b + 1, 1 - slot)

    # Wait for this batch's rows (issued on the previous step, or just above).
    for j in range(seq_len):
        if j == 1:
            continue
        pltpu.make_async_copy(tok_hbm_ref.at[0], rows_vmem.at[slot, j],
                              copy_sems.at[slot, j]).wait()

    out_ref[...] = rows_vmem[slot] + pos_ref[...]
    out_ref[1, :] = learned_ref[0, 0, :] + pos_ref[1, :]


# ---------------------------------------------------------------------------
# Wrappers
# ---------------------------------------------------------------------------
def _learned_embedding(params, logits, gumbel, inv_tau):
    f32 = jnp.float32
    B = gumbel.shape[0]
    v_pad, d_pad, tk, td = params.v_pad, params.d_pad, params.tk, params.td
    kt = v_pad // tk
    itemsize = params.tok_a.dtype.itemsize
    dot_precision = (jax.lax.Precision.HIGHEST
                     if params.tok_a.dtype == jnp.float32
                     else jax.lax.Precision.DEFAULT)

    if kt == 1 and d_pad == td:
        return pl.pallas_call(
            functools.partial(_learned_single_kernel,
                              dot_precision=dot_precision),
            out_shape=jax.ShapeDtypeStruct((B, d_pad), f32),
            grid_spec=pltpu.PrefetchScalarGridSpec(
                num_scalar_prefetch=0,
                grid=(1,),
                in_specs=[
                    pl.BlockSpec((1, v_pad), lambda i: (0, 0)),
                    pl.BlockSpec((B, v_pad), lambda i: (0, 0)),
                    pl.BlockSpec((v_pad, d_pad), lambda i: (0, 0)),
                    pl.BlockSpec((1, 1), lambda i: (0, 0),
                                 memory_space=pltpu.MemorySpace.SMEM),
                ],
                out_specs=pl.BlockSpec((B, d_pad), lambda i: (0, 0))),
            compiler_params=pltpu.CompilerParams(
                dimension_semantics=("arbitrary",),
                vmem_limit_bytes=48 * 1024 * 1024),
            cost_estimate=pl.CostEstimate(
                flops=2 * B * v_pad * d_pad + 8 * B * v_pad,
                transcendentals=B * v_pad,
                bytes_accessed=(itemsize * v_pad * d_pad
                                + 4 * (2 * B * v_pad + B * d_pad))),
        )(logits, gumbel, params.tok_a, inv_tau)

    nd = d_pad // td
    return pl.pallas_call(
        functools.partial(_learned_stream_kernel, dot_precision=dot_precision),
        out_shape=jax.ShapeDtypeStruct((B, d_pad), f32),
        grid_spec=pltpu.PrefetchScalarGridSpec(
            num_scalar_prefetch=0,
            grid=(nd, kt),
            in_specs=[
                pl.BlockSpec((1, tk), lambda d, k: (0, k)),          # logits
                pl.BlockSpec((B, tk), lambda d, k: (0, k)),          # gumbel
                pl.BlockSpec((tk, td), lambda d, k: (k, d)),         # table tile
                pl.BlockSpec((1, 1), lambda d, k: (0, 0),
                             memory_space=pltpu.MemorySpace.SMEM),   # 1/tau
            ],
            out_specs=pl.BlockSpec((B, td), lambda d, k: (0, d)),
            scratch_shapes=[
                pltpu.VMEM((B, 1), f32),      # running max
                pltpu.VMEM((B, 1), f32),      # running denom
                pltpu.VMEM((B, td), f32),     # accumulator
            ]),
        compiler_params=pltpu.CompilerParams(
            dimension_semantics=("parallel", "arbitrary"),
            vmem_limit_bytes=48 * 1024 * 1024),
        cost_estimate=pl.CostEstimate(
            flops=2 * B * v_pad * d_pad + 8 * B * v_pad * nd,
            transcendentals=2 * B * v_pad * nd,
            bytes_accessed=(itemsize * v_pad * d_pad * nd
                            + 4 * (2 * B * v_pad * nd + B * d_pad))),
    )(logits, gumbel, params.tok_a, inv_tau)


def _gather_resident(params, ids, pos, learned3, B, S):
    d_pad = params.d_pad
    f32 = jnp.float32
    # Batch TB sequences per grid step (amortize ~0.35us/step grid overhead).
    tb = 1
    for cand in range(min(B, max(1, 256 // S)), 0, -1):
        if B % cand == 0:
            tb = cand
            break
    return pl.pallas_call(
        functools.partial(_gather_resident_kernel, seq_len=S, tb=tb),
        out_shape=jax.ShapeDtypeStruct((B * S, d_pad), f32),
        grid_spec=pltpu.PrefetchScalarGridSpec(
            num_scalar_prefetch=1,                                   # token ids -> SMEM
            grid=(B // tb,),
            in_specs=[
                pl.BlockSpec((params.v_pad, d_pad), lambda g, _ids: (0, 0)),
                pl.BlockSpec((S, d_pad), lambda g, _ids: (0, 0)),
                pl.BlockSpec((tb, 1, d_pad), lambda g, _ids: (g, 0, 0)),
            ],
            out_specs=pl.BlockSpec((tb * S, d_pad), lambda g, _ids: (g, 0))),
        compiler_params=pltpu.CompilerParams(
            dimension_semantics=("parallel",),
            vmem_limit_bytes=32 * 1024 * 1024),
    )(ids, params.tok_b, pos, learned3)


def _gather_dma(params, ids, pos, learned3, B, S):
    d_pad = params.d_pad
    f32 = jnp.float32
    return pl.pallas_call(
        functools.partial(_gather_dma_kernel, seq_len=S),
        out_shape=jax.ShapeDtypeStruct((B * S, d_pad), f32),
        grid_spec=pltpu.PrefetchScalarGridSpec(
            num_scalar_prefetch=1,                                   # token ids -> SMEM
            grid=(B,),
            in_specs=[
                pl.BlockSpec(memory_space=pl.ANY),                   # table in HBM
                pl.BlockSpec((S, d_pad), lambda b, _ids: (0, 0)),
                pl.BlockSpec((1, 1, d_pad), lambda b, _ids: (b, 0, 0)),
            ],
            out_specs=pl.BlockSpec((S, d_pad), lambda b, _ids: (b, 0)),
            scratch_shapes=[
                pltpu.VMEM((2, S, d_pad), f32),    # double-buffered gathered rows
                pltpu.SemaphoreType.DMA((2, S)),   # one sem per row per slot
            ]),
        compiler_params=pltpu.CompilerParams(
            dimension_semantics=("arbitrary",),   # cross-step double buffering
            vmem_limit_bytes=32 * 1024 * 1024),
    )(ids, params.tok_b, pos, learned3)


def classifier_forward(params, token_logits, x, gumbel_noise, temperature):
    B, S = x.shape
    V, D = params.vocab_size, params.d_model
    v_pad, d_pad = params.v_pad, params.d_pad
    assert S % _SUBLANE == 0, "sequence length must be a multiple of 8"
    f32 = jnp.float32

    # Per-call activations only (the big table pad/cast is done in prepare()).
    logits = jnp.pad(jnp.asarray(token_logits, f32).reshape(1, V),
                     ((0, 0), (0, v_pad - V)), constant_values=-1e30)
    gumbel = jnp.pad(jnp.asarray(gumbel_noise, f32), ((0, 0), (0, v_pad - V)))
    inv_tau = jnp.full((1, 1), 1.0 / temperature, dtype=f32)
    ids = x.reshape(-1).astype(jnp.int32)          # flat 1D ids -> compact SMEM
    pos = params.pos[:S]

    learned = _learned_embedding(params, logits, gumbel, inv_tau)
    learned3 = learned.reshape(B, 1, d_pad)

    if params.resident_gather:
        try:
            out_flat = _gather_resident(params, ids, pos, learned3, B, S)
        except Exception:  # defensive: fall back to the DMA gather path
            out_flat = _gather_dma(params, ids, pos, learned3, B, S)
    else:
        out_flat = _gather_dma(params, ids, pos, learned3, B, S)

    out = out_flat.reshape(B, S, d_pad)
    # TODO(synk): production consumers should take the lane-dense padded
    # (B, S, D_pad) output directly; this slice materializes an extra copy.
    return out[:, :, :D] if D != d_pad else out


def reference_forward(x, token_logits, gumbel_noise, token_embed_matrix,
                      pos_embed_table, temperature):
    """Pure-JAX reference mirroring the PyTorch forward."""
    B, S = x.shape
    tok = token_embed_matrix[x]                                      # (B, S, D)
    y = (token_logits[None, :] + gumbel_noise) / temperature
    soft = jax.nn.softmax(y, axis=-1)
    learned = jnp.dot(soft, token_embed_matrix,
                      precision=jax.lax.Precision.HIGHEST)           # (B, D)
    tok = tok.at[:, 1, :].set(learned)
    return tok + pos_embed_table[:S][None, :, :]


if __name__ == "__main__":
    B, S, V, D = 2, 8, 32, 32
    MAX_POS = 16

    key = jax.random.PRNGKey(0)
    k_tok, k_pos, k_x, k_g = jax.random.split(key, 4)

    # Deterministic "pretrained" embedding tables (module __init__ shapes).
    token_embed_data = jax.random.normal(k_tok, (V, D), dtype=jnp.float32)
    pos_embed_data = jax.random.normal(k_pos, (MAX_POS, D), dtype=jnp.float32)
    token_logits = jnp.zeros((V,), dtype=jnp.float32)  # nn.Parameter(zeros(V))

    x = jax.random.randint(k_x, (B, S), 0, V, dtype=jnp.int32)
    temperature = 0.7

    # Gumbel noise for F.gumbel_softmax: g = -log(-log(U)), U ~ Uniform(0,1).
    u = jax.random.uniform(k_g, (B, V), dtype=jnp.float32,
                           minval=1e-6, maxval=1.0 - 1e-6)
    gumbel_noise = -jnp.log(-jnp.log(u))

    # --- check 1: default config (resident gather + single-tile softmax) ----
    params = prepare_classifier(token_embed_data, pos_embed_data)
    out = classifier_forward(params, token_logits, x, gumbel_noise, temperature)
    out = jax.block_until_ready(out)
    ref = reference_forward(x, token_logits, gumbel_noise, token_embed_data,
                            pos_embed_data, temperature)
    assert out.shape == (B, S, D) and out.dtype == jnp.float32
    assert jnp.allclose(out, ref, rtol=1e-4, atol=1e-4)

    # --- check 2: large-table code paths (streamed online-softmax matmul +
    #              double-buffered DMA gather), forced via small thresholds ---
    V2 = 300
    k2_tok, k2_x, k2_g, k2_l = jax.random.split(jax.random.PRNGKey(1), 4)
    tok2 = jax.random.normal(k2_tok, (V2, D), dtype=jnp.float32)
    logits2 = 0.1 * jax.random.normal(k2_l, (V2,), dtype=jnp.float32)
    x2 = jax.random.randint(k2_x, (B, S), 0, V2, dtype=jnp.int32)
    u2 = jax.random.uniform(k2_g, (B, V2), dtype=jnp.float32,
                            minval=1e-6, maxval=1.0 - 1e-6)
    g2 = -jnp.log(-jnp.log(u2))
    params2 = prepare_classifier(tok2, pos_embed_data, max_tk=128,
                                 resident_table_max_bytes=0)
    out2 = jax.block_until_ready(
        classifier_forward(params2, logits2, x2, g2, temperature))
    ref2 = reference_forward(x2, logits2, g2, tok2, pos_embed_data, temperature)
    assert jnp.allclose(out2, ref2, rtol=1e-4, atol=1e-4)

    # --- check 3: bf16 table stream for the learned-embedding matmul --------
    params3 = prepare_classifier(token_embed_data, pos_embed_data,
                                 use_bf16_matmul=True)
    out3 = jax.block_until_ready(
        classifier_forward(params3, token_logits, x, gumbel_noise, temperature))
    assert jnp.allclose(out3, ref, rtol=2e-2, atol=2e-2)

    print("KERNEL_OK")
</pallas_src>

<mosaic_0001>
module attributes {stable_mosaic.version = 11 : i64} {
  func.func @_learned_single_kernel(%arg0: i32, %arg1: memref<1x128xf32, #tpu.memory_space<vmem>>, %arg2: memref<2x128xf32, #tpu.memory_space<vmem>>, %arg3: memref<128x128xf32, #tpu.memory_space<vmem>>, %arg4: memref<1x1xf32, #tpu.memory_space<smem>>, %arg5: memref<2x128xf32, #tpu.memory_space<vmem>>) attributes {dimension_semantics = [#tpu.dimension_semantics<arbitrary>], iteration_bounds = array<i64: 1>, scalar_prefetch = 0 : i64, scratch_operands = 0 : i64, tpu.core_type = #tpu.core_type<tc>, window_params = [{pipeline_mode = #tpu.pipeline_mode<synchronous>, transform_indices = @transform_0, window_bounds = array<i64: 1, 128>}, {pipeline_mode = #tpu.pipeline_mode<synchronous>, transform_indices = @transform_1, window_bounds = array<i64: 2, 128>}, {pipeline_mode = #tpu.pipeline_mode<synchronous>, transform_indices = @transform_2, window_bounds = array<i64: 128, 128>}, {transform_indices = @transform_3, window_bounds = array<i64: 1, 1>}, {pipeline_mode = #tpu.pipeline_mode<synchronous>, transform_indices = @transform_4, window_bounds = array<i64: 2, 128>}]} {
    %c0 = arith.constant 0 : index
    %c0_0 = arith.constant 0 : index
    %0 = vector.load %arg1[%c0, %c0_0] : memref<1x128xf32, #tpu.memory_space<vmem>>, vector<1x128xf32>
    %c0_1 = arith.constant 0 : index
    %c0_2 = arith.constant 0 : index
    %1 = vector.load %arg2[%c0_1, %c0_2] : memref<2x128xf32, #tpu.memory_space<vmem>>, vector<2x128xf32>
    %2 = vector.broadcast %0 : vector<1x128xf32> to vector<2x128xf32>
    %3 = arith.addf %2, %1 : vector<2x128xf32>
    %c0_3 = arith.constant 0 : index
    %c0_4 = arith.constant 0 : index
    %4 = memref.load %arg4[%c0_3, %c0_4] : memref<1x1xf32, #tpu.memory_space<smem>>
    %5 = vector.broadcast %4 : f32 to vector<2x128xf32>
    %6 = arith.mulf %3, %5 : vector<2x128xf32>
    %cst = arith.constant dense<0xFF800000> : vector<2xf32>
    %7 = vector.multi_reduction <maximumf>, %6, %cst [1] : vector<2x128xf32> to vector<2xf32>
    %8 = vector.shape_cast %7 : vector<2xf32> to vector<2x1xf32>
    %9 = vector.broadcast %8 : vector<2x1xf32> to vector<2x128xf32>
    %10 = arith.subf %6, %9 : vector<2x128xf32>
    %11 = math.exp %10 : vector<2x128xf32>
    %cst_5 = arith.constant dense<0.000000e+00> : vector<2xf32>
    %12 = vector.multi_reduction <add>, %11, %cst_5 [1] : vector<2x128xf32> to vector<2xf32>
    %13 = vector.shape_cast %12 : vector<2xf32> to vector<2x1xf32>
    %14 = tpu.reciprocal %13 : vector<2x1xf32> -> vector<2x1xf32>
    %15 = vector.broadcast %14 : vector<2x1xf32> to vector<2x128xf32>
    %16 = arith.mulf %11, %15 : vector<2x128xf32>
    %c0_6 = arith.constant 0 : index
    %c0_7 = arith.constant 0 : index
    %17 = vector.load %arg3[%c0_6, %c0_7] : memref<128x128xf32, #tpu.memory_space<vmem>>, vector<128x128xf32>
    %cst_8 = arith.constant dense<0.000000e+00> : vector<2x128xf32>
    %18 = tpu.matmul %16, %17, %cst_8 {dimension_numbers = #tpu.dot_dimension_numbers<[1], [0], [0], [1], [0, 0, 1, 1], [], []>, precision = #tpu.contract_precision<fp32>} : vector<2x128xf32>, vector<128x128xf32>, vector<2x128xf32> -> vector<2x128xf32>
    %c0_9 = arith.constant 0 : index
    %c0_10 = arith.constant 0 : index
    %19 = vector.load %arg5[%c0_9, %c0_10] : memref<2x128xf32, #tpu.memory_space<vmem>>, vector<2x128xf32>
    tpu.vector_store %arg5[%c0_9, %c0_10], %18 {strides = array<i32>} : memref<2x128xf32, #tpu.memory_space<vmem>>, vector<2x128xf32>,
    return
  }
  func.func @transform_0(%arg0: i32) -> (i32, i32) {
    %c0_i32 = arith.constant 0 : i32
    %c0_i32_0 = arith.constant 0 : i32
    %c0_i32_1 = arith.constant 0 : i32
    return %c0_i32, %c0_i32_0 : i32, i32
  }
  func.func @transform_1(%arg0: i32) -> (i32, i32) {
    %c0_i32 = arith.constant 0 : i32
    %c0_i32_0 = arith.constant 0 : i32
    %c0_i32_1 = arith.constant 0 : i32
    return %c0_i32, %c0_i32_0 : i32, i32
  }
  func.func @transform_2(%arg0: i32) -> (i32, i32) {
    %c0_i32 = arith.constant 0 : i32
    %c0_i32_0 = arith.constant 0 : i32
    %c0_i32_1 = arith.constant 0 : i32
    return %c0_i32, %c0_i32_0 : i32, i32
  }
  func.func @transform_3(%arg0: i32) -> (i32, i32) {
    %c0_i32 = arith.constant 0 : i32
    %c0_i32_0 = arith.constant 0 : i32
    %c0_i32_1 = arith.constant 0 : i32
    return %c0_i32, %c0_i32_0 : i32, i32
  }
  func.func @transform_4(%arg0: i32) -> (i32, i32) {
    %c0_i32 = arith.constant 0 : i32
    %c0_i32_0 = arith.constant 0 : i32
    %c0_i32_1 = arith.constant 0 : i32
    return %c0_i32, %c0_i32_0 : i32, i32
  }
}

</mosaic_0001>

<llo_original>
// kernel: tpu_custom_call.1
$region0: #{tpu_custom_call.1}
  #allocation0 [shape = 'u32[]', space=smem, size = 0x4, offset = 0x4, fixed_abs, tag = 'smem constant byte address 0x4 - core index']
  #allocation1 [shape = 'u32[72,128]{1,0:T(1,128)}', space=vmem, size = 0x9000, scoped, tag = 'internal scratch']
  #allocation2 [shape = 'f32[1,1]{1,0:T(1,128)S(6)}', space=smem, size = 0x200, scoped, tag = 'scoped memory for tpu_custom_call.1']
  %s0 = inlined_call_operand.hbm [shape: f32[1,128], index: 0, kind: input, shape index: {}]
  %s1 = inlined_call_operand.vmem [shape: f32[2,128], index: 1, kind: input, shape index: {}]
  %s2 = inlined_call_operand.hbm [shape: f32[128,128], index: 2, kind: input, shape index: {}]
  %s3 = inlined_call_operand.<no memory space> [shape: f32[1,1], index: 3, kind: input, shape index: {}]
  %s4 = inlined_call_operand.hbm [shape: f32[2,128], index: 4, kind: output, shape index: {}]
  %s5 = sld [smem:[#allocation0]]
  $region34: #{tpu_custom_call.1} parent=0
    _
  %s7 = ssub.s32 1, %s5
  %s8 = scalar_select 0, %s7, %s5
  %9 = sst [smem:[#allocation2]] %s3
  $region1: #{tpu_custom_call.1} parent=0
    #allocation3 [shape = 'u8[512]{0}', space=vmem, size = 0x400, scoped, tag = 'input window, operand 0, single buffered']
    #allocation4 [shape = 's32[1]{0}', space=sflag, size = 0x4, scoped, tag = 'scoped memory for tpu_custom_call.1']
    #allocation5 [shape = 's32[1]{0}', space=sflag, size = 0x4, scoped, tag = 'scoped memory for tpu_custom_call.1']
    #allocation6 [shape = 'u8[65536]{0}', space=vmem, size = 0x10000, scoped, tag = 'input window, operand 2, single buffered']
    #allocation7 [shape = 's32[1]{0}', space=sflag, size = 0x4, scoped, tag = 'scoped memory for tpu_custom_call.1']
    #allocation8 [shape = 'u8[1024]{0}', space=vmem, size = 0x400, scoped, tag = 'output window, operand 0, single buffered']
    %10 = vsyncpa [#allocation4], 0
    %11 = vsyncpa [#allocation7], 0
    %12 = vsyncpa [#allocation5], 0
    // Predicated region
    $region2: #{tpu_custom_call.1} parent=1 // pred_check
      _
    $region3: #{tpu_custom_call.1} parent=1 // pred_check_branch
      %14 = sbr.rel (0) target = $region5
    $region4: #{tpu_custom_call.1} parent=1 // pred_region
      %16 = vsyncadd [#allocation4], 0
      %s18 = sshll.u32 %s0, 4
      %s19 = int_to_ptr.hbm [resolvable:$true] %s18
      %s20 = sshll.u32 [#allocation3], 4
      %s21 = int_to_ptr.vmem [resolvable:$true] %s20
      %23 = dma.hbm_to_vmem [thread:$0]  %s19, 16, %s21, [#allocation4]
    $region5: #{tpu_custom_call.1} parent=1 // pred_fallthru
      _
    // Predicated region
    $region6: #{tpu_custom_call.1} parent=1 // pred_check
      _
    $region7: #{tpu_custom_call.1} parent=1 // pred_check_branch
      %25 = sbr.rel (0) target = $region9
    $region8: #{tpu_custom_call.1} parent=1 // pred_region
      _
    $region9: #{tpu_custom_call.1} parent=1 // pred_fallthru
      _
    // Predicated region
    $region10: #{tpu_custom_call.1} parent=1 // pred_check
      _
    $region11: #{tpu_custom_call.1} parent=1 // pred_check_branch
      %27 = sbr.rel (0) target = $region13
    $region12: #{tpu_custom_call.1} parent=1 // pred_region
      %29 = vsyncadd [#allocation7], 0
      %s30 = sshll.u32 %s2, 4
      %s31 = int_to_ptr.hbm [resolvable:$true] %s30
      %s32 = sshll.u32 [#allocation6], 4
      %s33 = int_to_ptr.vmem [resolvable:$true] %s32
      %38 = dma.hbm_to_vmem [thread:$0]  %s31, 2048, %s33, [#allocation7], 128, 128, 8
    $region13: #{tpu_custom_call.1} parent=1 // pred_fallthru
      _
    // Predicated region
    $region14: #{tpu_custom_call.1} parent=1 // pred_check
      _
    $region15: #{tpu_custom_call.1} parent=1 // pred_check_branch
      %40 = sbr.rel (0) target = $region17
    $region16: #{tpu_custom_call.1} parent=1 // pred_region
      _
    $region17: #{tpu_custom_call.1} parent=1 // pred_fallthru
      _
    // Predicated region
    $region18: #{tpu_custom_call.1} parent=1 // pred_check
      _
    $region19: #{tpu_custom_call.1} parent=1 // pred_check_branch
      %42 = sbr.rel (0) target = $region21
    $region20: #{tpu_custom_call.1} parent=1 // pred_region
      %44 = dma.done [#allocation4], 16
    $region21: #{tpu_custom_call.1} parent=1 // pred_fallthru
      _
    // Predicated region
    $region22: #{tpu_custom_call.1} parent=1 // pred_check
      _
    $region23: #{tpu_custom_call.1} parent=1 // pred_check_branch
      %46 = sbr.rel (0) target = $region25
    $region24: #{tpu_custom_call.1} parent=1 // pred_region
      %48 = dma.done [#allocation7], 2048
    $region25: #{tpu_custom_call.1} parent=1 // pred_fallthru
      _
    %v49 = vld [vmem:[#allocation3] sm:$0x1]
    %v50 = vld [vmem:[%s1] sm:$0x3]
    %v52 = vperm.slane %v49, 0
    %v54 = vadd.f32 %v52, %v50
    %s55 = sld [smem:[#allocation2]]
    %v56 = vstv %s55
    %v57 = vmul.f32 %v54, %v56
    %vm58 = vcmask 1041408
    %v59 = vsel %vm58, %v57, -inf
    %60 = vmax.xlane.f32.xlu0 %v59
    %v61 = vpop.xlane.xlu0 %60
    %v62 = vsub.f32 %v57, %v61
    %v63 = vmul.f32 %v62, 1.442695
    %v64 = vpow.pop %v63
    %v65 = vsel %vm58, %v64, 0.0
    %66 = vadd.xlane.f32.xlu0 %v65
    %v67 = vpop.xlane.xlu0 %66
    %v68 = vrcp.pop %v67
    %v69 = vmul.f32 %v67, %v68
    %v70 = vsub.f32 1.0, %v69
    %v71 = vmul.f32 %v68, %v70
    %v72 = vadd.f32 %v68, %v71
    %vm73 = vweird.f32 %v67
    %vm74 = vweird.f32 %v68
    %vm75 = vmor %vm73, %vm74
    %v76 = vsel %vm75, %v68, %v72
    %v77 = vand.u32 2147483647, %v67
    %vm78 = vcmp.eq.f32.partialorder %v77, 8.507059e+37
    %v79 = vand.u32 %v67, 2147483648
    %v80 = vor.u32 1.1754944e-38, %v79
    %v81 = vsel %vm78, %v80, %v76
    %v82 = vmul.f32 %v64, %v81
    %v83 = vld [vmem:[#allocation6] sm:$0xff]
    %v84 = vld [vmem:[#allocation6 + $0x8] sm:$0xff]
    %v85 = vld [vmem:[#allocation6 + $0x10] sm:$0xff]
    %v86 = vld [vmem:[#allocation6 + $0x18] sm:$0xff]
    %v87 = vld [vmem:[#allocation6 + $0x20] sm:$0xff]
    %v88 = vld [vmem:[#allocation6 + $0x28] sm:$0xff]
    %v89 = vld [vmem:[#allocation6 + $0x30] sm:$0xff]
    %v90 = vld [vmem:[#allocation6 + $0x38] sm:$0xff]
    %v91 = vld [vmem:[#allocation6 + $0x40] sm:$0xff]
    %v92 = vld [vmem:[#allocation6 + $0x48] sm:$0xff]
    %v93 = vld [vmem:[#allocation6 + $0x50] sm:$0xff]
    %v94 = vld [vmem:[#allocation6 + $0x58] sm:$0xff]
    %v95 = vld [vmem:[#allocation6 + $0x60] sm:$0xff]
    %v96 = vld [vmem:[#allocation6 + $0x68] sm:$0xff]
    %v97 = vld [vmem:[#allocation6 + $0x70] sm:$0xff]
    %v98 = vld [vmem:[#allocation6 + $0x78] sm:$0xff]
    %v99 = vand.u32 %v98, 4294901760
    %100 = vmatpush.msra.mxu0 %v99
    %v101 = vand.u32 %v97, 4294901760
    %102 = vmatpush.msra.mxu0 %v101
    %v103 = vand.u32 %v96, 4294901760
    %104 = vmatpush.msra.mxu0 %v103
    %v105 = vand.u32 %v95, 4294901760
    %106 = vmatpush.msra.mxu0 %v105
    %v107 = vand.u32 %v94, 4294901760
    %108 = vmatpush.msra.mxu0 %v107
    %v109 = vand.u32 %v93, 4294901760
    %110 = vmatpush.msra.mxu0 %v109
    %v111 = vand.u32 %v92, 4294901760
    %112 = vmatpush.msra.mxu0 %v111
    %v113 = vand.u32 %v91, 4294901760
    %114 = vmatpush.msra.mxu0 %v113
    %v115 = vand.u32 %v90, 4294901760
    %116 = vmatpush.msra.mxu0 %v115
    %v117 = vand.u32 %v89, 4294901760
    %118 = vmatpush.msra.mxu0 %v117
    %v119 = vand.u32 %v88, 4294901760
    %120 = vmatpush.msra.mxu0 %v119
    %v121 = vand.u32 %v87, 4294901760
    %122 = vmatpush.msra.mxu0 %v121
    %v123 = vand.u32 %v86, 4294901760
    %124 = vmatpush.msra.mxu0 %v123
    %v125 = vand.u32 %v85, 4294901760
    %126 = vmatpush.msra.mxu0 %v125
    %v127 = vand.u32 %v84, 4294901760
    %128 = vmatpush.msra.mxu0 %v127
    %v129 = vand.u32 %v83, 4294901760
    %130 = vmatpush.msra.mxu0 %v129
    %v131 = vand.u32 %v82, 4294901760
    %v132 = vsub.f32 %v82, %v131
    %v133 = vand.u32 %v132, 4294901760
    %v134 = vsub.f32 %v132, %v133
    %v135 = vand.u32 %v134, 4294901760
    %136 = vmatmul.f32.gmra.mxu0 %v135
    %v137 = vpop.f32.mrf.mxu0
    %v138 = vadd.f32 0.0, %v137
    %139 = vdwg.mxu0
    %v140 = vand.u32 %v98, 4294901760
    %v141 = vsub.f32 %v98, %v140
    %v142 = vand.u32 %v141, 4294901760
    %v143 = vsub.f32 %v141, %v142
    %v144 = vand.u32 %v143, 4294901760
    %145 = vmatpush.msra.mxu0 %v144
    %v146 = vand.u32 %v97, 4294901760
    %v147 = vsub.f32 %v97, %v146
    %v148 = vand.u32 %v147, 4294901760
    %v149 = vsub.f32 %v147, %v148
    %v150 = vand.u32 %v149, 4294901760
    %151 = vmatpush.msra.mxu0 %v150
    %v152 = vand.u32 %v96, 4294901760
    %v153 = vsub.f32 %v96, %v152
    %v154 = vand.u32 %v153, 4294901760
    %v155 = vsub.f32 %v153, %v154
    %v156 = vand.u32 %v155, 4294901760
    %157 = vmatpush.msra.mxu0 %v156
    %v158 = vand.u32 %v95, 4294901760
    %v159 = vsub.f32 %v95, %v158
    %v160 = vand.u32 %v159, 4294901760
    %v161 = vsub.f32 %v159, %v160
    %v162 = vand.u32 %v161, 4294901760
    %163 = vmatpush.msra.mxu0 %v162
    %v164 = vand.u32 %v94, 4294901760
    %v165 = vsub.f32 %v94, %v164
    %v166 = vand.u32 %v165, 4294901760
    %v167 = vsub.f32 %v165, %v166
    %v168 = vand.u32 %v167, 4294901760
    %169 = vmatpush.msra.mxu0 %v168
    %v170 = vand.u32 %v93, 4294901760
    %v171 = vsub.f32 %v93, %v170
    %v172 = vand.u32 %v171, 4294901760
    %v173 = vsub.f32 %v171, %v172
    %v174 = vand.u32 %v173, 4294901760
    %175 = vmatpush.msra.mxu0 %v174
    %v176 = vand.u32 %v92, 4294901760
    %v177 = vsub.f32 %v92, %v176
    %v178 = vand.u32 %v177, 4294901760
    %v179 = vsub.f32 %v177, %v178
    %v180 = vand.u32 %v179, 4294901760
    %181 = vmatpush.msra.mxu0 %v180
    %v182 = vand.u32 %v91, 4294901760
    %v183 = vsub.f32 %v91, %v182
    %v184 = vand.u32 %v183, 4294901760
    %v185 = vsub.f32 %v183, %v184
    %v186 = vand.u32 %v185, 4294901760
    %187 = vmatpush.msra.mxu0 %v186
    %v188 = vand.u32 %v90, 4294901760
    %v189 = vsub.f32 %v90, %v188
    %v190 = vand.u32 %v189, 4294901760
    %v191 = vsub.f32 %v189, %v190
    %v192 = vand.u32 %v191, 4294901760
    %193 = vmatpush.msra.mxu0 %v192
    %v194 = vand.u32 %v89, 4294901760
    %v195 = vsub.f32 %v89, %v194
    %v196 = vand.u32 %v195, 4294901760
    %v197 = vsub.f32 %v195, %v196
    %v198 = vand.u32 %v197, 4294901760
    %199 = vmatpush.msra.mxu0 %v198
    %v200 = vand.u32 %v88, 4294901760
    %v201 = vsub.f32 %v88, %v200
    %v202 = vand.u32 %v201, 4294901760
    %v203 = vsub.f32 %v201, %v202
    %v204 = vand.u32 %v203, 4294901760
    %205 = vmatpush.msra.mxu0 %v204
    %v206 = vand.u32 %v87, 4294901760
    %v207 = vsub.f32 %v87, %v206
    %v208 = vand.u32 %v207, 4294901760
    %v209 = vsub.f32 %v207, %v208
    %v210 = vand.u32 %v209, 4294901760
    %211 = vmatpush.msra.mxu0 %v210
    %v212 = vand.u32 %v86, 4294901760
    %v213 = vsub.f32 %v86, %v212
    %v214 = vand.u32 %v213, 4294901760
    %v215 = vsub.f32 %v213, %v214
    %v216 = vand.u32 %v215, 4294901760
    %217 = vmatpush.msra.mxu0 %v216
    %v218 = vand.u32 %v85, 4294901760
    %v219 = vsub.f32 %v85, %v218
    %v220 = vand.u32 %v219, 4294901760
    %v221 = vsub.f32 %v219, %v220
    %v222 = vand.u32 %v221, 4294901760
    %223 = vmatpush.msra.mxu0 %v222
    %v224 = vand.u32 %v84, 4294901760
    %v225 = vsub.f32 %v84, %v224
    %v226 = vand.u32 %v225, 4294901760
    %v227 = vsub.f32 %v225, %v226
    %v228 = vand.u32 %v227, 4294901760
    %229 = vmatpush.msra.mxu0 %v228
    %v230 = vand.u32 %v83, 4294901760
    %v231 = vsub.f32 %v83, %v230
    %v232 = vand.u32 %v231, 4294901760
    %v233 = vsub.f32 %v231, %v232
    %v234 = vand.u32 %v233, 4294901760
    %235 = vmatpush.msra.mxu0 %v234
    %v236 = vand.u32 %v82, 4294901760
    %237 = vmatmul.f32.gmra.mxu0 %v236
    %v238 = vpop.f32.mrf.mxu0
    %v239 = vadd.f32 %v138, %v238
    %240 = vdwg.mxu0
    %v241 = vand.u32 %v98, 4294901760
    %v242 = vsub.f32 %v98, %v241
    %243 = vmatpush.msra.mxu0 %v242
    %v244 = vand.u32 %v97, 4294901760
    %v245 = vsub.f32 %v97, %v244
    %246 = vmatpush.msra.mxu0 %v245
    %v247 = vand.u32 %v96, 4294901760
    %v248 = vsub.f32 %v96, %v247
    %249 = vmatpush.msra.mxu0 %v248
    %v250 = vand.u32 %v95, 4294901760
    %v251 = vsub.f32 %v95, %v250
    %252 = vmatpush.msra.mxu0 %v251
    %v253 = vand.u32 %v94, 4294901760
    %v254 = vsub.f32 %v94, %v253
    %255 = vmatpush.msra.mxu0 %v254
    %v256 = vand.u32 %v93, 4294901760
    %v257 = vsub.f32 %v93, %v256
    %258 = vmatpush.msra.mxu0 %v257
    %v259 = vand.u32 %v92, 4294901760
    %v260 = vsub.f32 %v92, %v259
    %261 = vmatpush.msra.mxu0 %v260
    %v262 = vand.u32 %v91, 4294901760
    %v263 = vsub.f32 %v91, %v262
    %264 = vmatpush.msra.mxu0 %v263
    %v265 = vand.u32 %v90, 4294901760
    %v266 = vsub.f32 %v90, %v265
    %267 = vmatpush.msra.mxu0 %v266
    %v268 = vand.u32 %v89, 4294901760
    %v269 = vsub.f32 %v89, %v268
    %270 = vmatpush.msra.mxu0 %v269
    %v271 = vand.u32 %v88, 4294901760
    %v272 = vsub.f32 %v88, %v271
    %273 = vmatpush.msra.mxu0 %v272
    %v274 = vand.u32 %v87, 4294901760
    %v275 = vsub.f32 %v87, %v274
    %276 = vmatpush.msra.mxu0 %v275
    %v277 = vand.u32 %v86, 4294901760
    %v278 = vsub.f32 %v86, %v277
    %279 = vmatpush.msra.mxu0 %v278
    %v280 = vand.u32 %v85, 4294901760
    %v281 = vsub.f32 %v85, %v280
    %282 = vmatpush.msra.mxu0 %v281
    %v283 = vand.u32 %v84, 4294901760
    %v284 = vsub.f32 %v84, %v283
    %285 = vmatpush.msra.mxu0 %v284
    %v286 = vand.u32 %v83, 4294901760
    %v287 = vsub.f32 %v83, %v286
    %288 = vmatpush.msra.mxu0 %v287
    %v289 = vand.u32 %v82, 4294901760
    %v290 = vsub.f32 %v82, %v289
    %291 = vmatmul.f32.gmra.mxu0 %v290
    %v292 = vpop.f32.mrf.mxu0
    %v293 = vadd.f32 %v239, %v292
    %294 = vdwg.mxu0
    %v295 = vand.u32 %v98, 4294901760
    %296 = vmatpush.msra.mxu0 %v295
    %v297 = vand.u32 %v97, 4294901760
    %298 = vmatpush.msra.mxu0 %v297
    %v299 = vand.u32 %v96, 4294901760
    %300 = vmatpush.msra.mxu0 %v299
    %v301 = vand.u32 %v95, 4294901760
    %302 = vmatpush.msra.mxu0 %v301
    %v303 = vand.u32 %v94, 4294901760
    %304 = vmatpush.msra.mxu0 %v303
    %v305 = vand.u32 %v93, 4294901760
    %306 = vmatpush.msra.mxu0 %v305
    %v307 = vand.u32 %v92, 4294901760
    %308 = vmatpush.msra.mxu0 %v307
    %v309 = vand.u32 %v91, 4294901760
    %310 = vmatpush.msra.mxu0 %v309
    %v311 = vand.u32 %v90, 4294901760
    %312 = vmatpush.msra.mxu0 %v311
    %v313 = vand.u32 %v89, 4294901760
    %314 = vmatpush.msra.mxu0 %v313
    %v315 = vand.u32 %v88, 4294901760
    %316 = vmatpush.msra.mxu0 %v315
    %v317 = vand.u32 %v87, 4294901760
    %318 = vmatpush.msra.mxu0 %v317
    %v319 = vand.u32 %v86, 4294901760
    %320 = vmatpush.msra.mxu0 %v319
    %v321 = vand.u32 %v85, 4294901760
    %322 = vmatpush.msra.mxu0 %v321
    %v323 = vand.u32 %v84, 4294901760
    %324 = vmatpush.msra.mxu0 %v323
    %v325 = vand.u32 %v83, 4294901760
    %326 = vmatpush.msra.mxu0 %v325
    %v327 = vand.u32 %v82, 4294901760
    %v328 = vsub.f32 %v82, %v327
    %v329 = vand.u32 %v328, 4294901760
    %330 = vmatmul.f32.gmra.mxu0 %v329
    %v331 = vpop.f32.mrf.mxu0
    %v332 = vadd.f32 %v293, %v331
    %333 = vdwg.mxu0
    %v334 = vand.u32 %v98, 4294901760
    %v335 = vsub.f32 %v98, %v334
    %v336 = vand.u32 %v335, 4294901760
    %337 = vmatpush.msra.mxu0 %v336
    %v338 = vand.u32 %v97, 4294901760
    %v339 = vsub.f32 %v97, %v338
    %v340 = vand.u32 %v339, 4294901760
    %341 = vmatpush.msra.mxu0 %v340
    %v342 = vand.u32 %v96, 4294901760
    %v343 = vsub.f32 %v96, %v342
    %v344 = vand.u32 %v343, 4294901760
    %345 = vmatpush.msra.mxu0 %v344
    %v346 = vand.u32 %v95, 4294901760
    %v347 = vsub.f32 %v95, %v346
    %v348 = vand.u32 %v347, 4294901760
    %349 = vmatpush.msra.mxu0 %v348
    %v350 = vand.u32 %v94, 4294901760
    %v351 = vsub.f32 %v94, %v350
    %v352 = vand.u32 %v351, 4294901760
    %353 = vmatpush.msra.mxu0 %v352
    %v354 = vand.u32 %v93, 4294901760
    %v355 = vsub.f32 %v93, %v354
    %v356 = vand.u32 %v355, 4294901760
    %357 = vmatpush.msra.mxu0 %v356
    %v358 = vand.u32 %v92, 4294901760
    %v359 = vsub.f32 %v92, %v358
    %v360 = vand.u32 %v359, 4294901760
    %361 = vmatpush.msra.mxu0 %v360
    %v362 = vand.u32 %v91, 4294901760
    %v363 = vsub.f32 %v91, %v362
    %v364 = vand.u32 %v363, 4294901760
    %365 = vmatpush.msra.mxu0 %v364
    %v366 = vand.u32 %v90, 4294901760
    %v367 = vsub.f32 %v90, %v366
    %v368 = vand.u32 %v367, 4294901760
    %369 = vmatpush.msra.mxu0 %v368
    %v370 = vand.u32 %v89, 4294901760
    %v371 = vsub.f32 %v89, %v370
    %v372 = vand.u32 %v371, 4294901760
    %373 = vmatpush.msra.mxu0 %v372
    %v374 = vand.u32 %v88, 4294901760
    %v375 = vsub.f32 %v88, %v374
    %v376 = vand.u32 %v375, 4294901760
    %377 = vmatpush.msra.mxu0 %v376
    %v378 = vand.u32 %v87, 4294901760
    %v379 = vsub.f32 %v87, %v378
    %v380 = vand.u32 %v379, 4294901760
    %381 = vmatpush.msra.mxu0 %v380
    %v382 = vand.u32 %v86, 4294901760
    %v383 = vsub.f32 %v86, %v382
    %v384 = vand.u32 %v383, 4294901760
    %385 = vmatpush.msra.mxu0 %v384
    %v386 = vand.u32 %v85, 4294901760
    %v387 = vsub.f32 %v85, %v386
    %v388 = vand.u32 %v387, 4294901760
    %389 = vmatpush.msra.mxu0 %v388
    %v390 = vand.u32 %v84, 4294901760
    %v391 = vsub.f32 %v84, %v390
    %v392 = vand.u32 %v391, 4294901760
    %393 = vmatpush.msra.mxu0 %v392
    %v394 = vand.u32 %v83, 4294901760
    %v395 = vsub.f32 %v83, %v394
    %v396 = vand.u32 %v395, 4294901760
    %397 = vmatpush.msra.mxu0 %v396
    %v398 = vand.u32 %v82, 4294901760
    %399 = vmatmul.f32.gmra.mxu0 %v398
    %v400 = vpop.f32.mrf.mxu0
    %v401 = vadd.f32 %v332, %v400
    %402 = vdwg.mxu0
    %v403 = vand.u32 %v98, 4294901760
    %404 = vmatpush.msra.mxu0 %v403
    %v405 = vand.u32 %v97, 4294901760
    %406 = vmatpush.msra.mxu0 %v405
    %v407 = vand.u32 %v96, 4294901760
    %408 = vmatpush.msra.mxu0 %v407
    %v409 = vand.u32 %v95, 4294901760
    %410 = vmatpush.msra.mxu0 %v409
    %v411 = vand.u32 %v94, 4294901760
    %412 = vmatpush.msra.mxu0 %v411
    %v413 = vand.u32 %v93, 4294901760
    %414 = vmatpush.msra.mxu0 %v413
    %v415 = vand.u32 %v92, 4294901760
    %416 = vmatpush.msra.mxu0 %v415
    %v417 = vand.u32 %v91, 4294901760
    %418 = vmatpush.msra.mxu0 %v417
    %v419 = vand.u32 %v90, 4294901760
    %420 = vmatpush.msra.mxu0 %v419
    %v421 = vand.u32 %v89, 4294901760
    %422 = vmatpush.msra.mxu0 %v421
    %v423 = vand.u32 %v88, 4294901760
    %424 = vmatpush.msra.mxu0 %v423
    %v425 = vand.u32 %v87, 4294901760
    %426 = vmatpush.msra.mxu0 %v425
    %v427 = vand.u32 %v86, 4294901760
    %428 = vmatpush.msra.mxu0 %v427
    %v429 = vand.u32 %v85, 4294901760
    %430 = vmatpush.msra.mxu0 %v429
    %v431 = vand.u32 %v84, 4294901760
    %432 = vmatpush.msra.mxu0 %v431
    %v433 = vand.u32 %v83, 4294901760
    %434 = vmatpush.msra.mxu0 %v433
    %v435 = vand.u32 %v82, 4294901760
    %436 = vmatmul.f32.gmra.mxu0 %v435
    %v437 = vpop.f32.mrf.mxu0
    %v438 = vadd.f32 %v401, %v437
    %439 = vdwg.mxu0
    %440 = vst [vmem:[#allocation8] sm:$0x3] %v438
    // Predicated region
    $region26: #{tpu_custom_call.1} parent=1 // pred_check
      _
    $region27: #{tpu_custom_call.1} parent=1 // pred_check_branch
      %442 = sbr.rel (0) target = $region29
    $region28: #{tpu_custom_call.1} parent=1 // pred_region
      %444 = vsyncadd [#allocation5], 0
      %s446 = sshll.u32 [#allocation8], 4
      %s447 = int_to_ptr.vmem [resolvable:$true] %s446
      %s448 = sshll.u32 %s4, 4
      %s449 = int_to_ptr.hbm [resolvable:$true] %s448
      %451 = dma.vmem_to_hbm [thread:$0]  %s447, 32, %s449, [#allocation5]
    $region29: #{tpu_custom_call.1} parent=1 // pred_fallthru
      _
    // Predicated region
    $region30: #{tpu_custom_call.1} parent=1 // pred_check
      _
    $region31: #{tpu_custom_call.1} parent=1 // pred_check_branch
      %453 = sbr.rel (0) target = $region33
    $region32: #{tpu_custom_call.1} parent=1 // pred_region
      %455 = dma.done [#allocation5], 32
    $region33: #{tpu_custom_call.1} parent=1 // pred_fallthru
      _
    %456 = vsyncpa [#allocation4], 1
    %457 = vsyncpa [#allocation7], 1
    %458 = vsyncpa [#allocation5], 1

</llo_original>
